<compile_context>
chip_gen: v7x
topology: tpu7x:2x2x1
jax: 0.10.0
libtpu: 0.0.40
codegen_flags: <defaults>
</compile_context>

<pallas_src>
import functools

import jax
import jax.numpy as jnp
from jax import lax
from jax.experimental import pallas as pl
from jax.experimental.pallas import tpu as pltpu


# Contract axis 0 of both operands: computes A^T @ B without materializing A.T.
_CONTRACT0 = (((0,), (0,)), ((), ()))


def _cka_annihilation_kernel(x_ref, w_ref, b_ref, o_ref, *, gamma, mxu_dtype):
    x = x_ref[0].astype(jnp.float32)        # (N, D)
    w = w_ref[...].astype(jnp.float32)      # (D, C)
    b = b_ref[...].astype(jnp.float32)      # (1, C)

    eps = jnp.float32(1e-12)

    # ---- lcls (linear classifier) + softmax(dim=-1), f32 ----
    logits = jnp.dot(x, w, preferred_element_type=jnp.float32) + b
    m = jnp.max(logits, axis=-1, keepdims=True)
    e = jnp.exp(logits - m)
    p = e / jnp.sum(e, axis=-1, keepdims=True)            # (N, C)

    # ---- center over samples (rows); keep a single centered copy in the
    #      MXU dtype (bf16 by default) ----
    mx = jnp.mean(x, axis=0, keepdims=True)               # (1, D)
    mp = jnp.mean(p, axis=0, keepdims=True)               # (1, C)
    xc = (x - mx).astype(mxu_dtype)                       # (N, D)
    pc = (p - mp).astype(mxu_dtype)                       # (N, C)

    # ---- linear-CKA pieces: contract over the sample axis directly
    #      (no .T, no XLU transpose), f32 accumulation on the MXU ----
    xtx = lax.dot_general(xc, xc, _CONTRACT0,
                          preferred_element_type=jnp.float32)   # (D, D) = Xc^T Xc
    ptx = lax.dot_general(pc, xc, _CONTRACT0,
                          preferred_element_type=jnp.float32)   # (C, D) = Pc^T Xc
    ptp = lax.dot_general(pc, pc, _CONTRACT0,
                          preferred_element_type=jnp.float32)   # (C, C) = Pc^T Pc

    hsic_xp = jnp.sum(ptx * ptx)      # tr(Kc Lc)
    hsic_xx = jnp.sum(xtx * xtx)      # tr(Kc Kc) = ||Kc||_F^2
    hsic_pp = jnp.sum(ptp * ptp)      # tr(Lc Lc) = ||Lc||_F^2

    # ---- Lc Xc and Kc Xc via the small Gram factors (bf16 MXU, f32 acc) ----
    lc_x = jnp.dot(pc, ptx.astype(mxu_dtype),
                   preferred_element_type=jnp.float32)    # (N, D) = Lc Xc
    kc_x = jnp.dot(xc, xtx.astype(mxu_dtype),
                   preferred_element_type=jnp.float32)    # (N, D) = Kc Xc

    # ---- fused epilogue: fold every scalar before broadcasting over (N, D) ----
    scale_l = jnp.float32(2.0 * gamma) / (
        jnp.sqrt(hsic_xx) * jnp.sqrt(hsic_pp) + eps)
    scale_k = scale_l * hsic_xp / (hsic_xx + eps)
    o_ref[0] = (x + scale_l * lc_x - scale_k * kc_x).astype(o_ref.dtype)


def _vmem_limit_bytes(N, D, C):
    """Scoped-VMEM limit sized to the actual per-step footprint (padded to tiles)."""
    f32, bf16 = 4, 2
    npad = -(-N // 8) * 8
    dpad = -(-D // 128) * 128
    cpad = -(-C // 128) * 128
    nd, nc = npad * dpad, npad * cpad
    est = (
        4 * nd * f32                       # x / out blocks, double-buffered
        + 2 * (dpad * cpad + cpad) * f32   # w + b, double-buffered
        + nd * (bf16 + 2 * f32)            # xc (bf16) + lc_x + kc_x
        + nc * (bf16 + 2 * f32)            # pc (bf16) + logits + p
        + dpad * dpad * (f32 + bf16)       # xtx (+ bf16 copy)
        + cpad * dpad * (f32 + bf16)       # ptx (+ bf16 copy)
        + cpad * cpad * f32                # ptp
    )
    return max(32 * 1024 * 1024, min(100 * 1024 * 1024, int(1.5 * est)))


def compression_annilation(x, w, b, gamma=1.0, mxu_dtype=jnp.bfloat16):
    """x: (B, N, D); w: (D, C); b: (C,). Returns (B, N, D)."""
    B, N, D = x.shape
    C = w.shape[1]
    b2d = b.reshape(1, C)

    kernel = functools.partial(_cka_annihilation_kernel,
                               gamma=float(gamma), mxu_dtype=mxu_dtype)

    return pl.pallas_call(
        kernel,
        out_shape=jax.ShapeDtypeStruct((B, N, D), x.dtype),
        grid_spec=pltpu.PrefetchScalarGridSpec(
            num_scalar_prefetch=0,
            grid=(B,),
            in_specs=[
                pl.BlockSpec((1, N, D), lambda bi: (bi, 0, 0)),
                pl.BlockSpec((D, C), lambda bi: (0, 0)),
                pl.BlockSpec((1, C), lambda bi: (0, 0)),
            ],
            out_specs=pl.BlockSpec((1, N, D), lambda bi: (bi, 0, 0)),
        ),
        compiler_params=pltpu.CompilerParams(
            dimension_semantics=("parallel",),
            vmem_limit_bytes=_vmem_limit_bytes(N, D, C),
        ),
        # TODO(synk): pass input_output_aliases={0: 0} when the caller donates x
        # (in-place residual update); left off here because the test reuses x.
    )(x, w, b2d)


def _reference(x, w, b, gamma=1.0):
    """Pure-JAX f32 reference for correctness checking."""
    def one(xb):
        logits = xb @ w + b
        p = jax.nn.softmax(logits, axis=-1)
        xc = xb - xb.mean(0, keepdims=True)
        pc = p - p.mean(0, keepdims=True)
        xtx = xc.T @ xc
        ptx = pc.T @ xc
        ptp = pc.T @ pc
        hsic_xp = jnp.sum(ptx * ptx)
        hsic_xx = jnp.sum(xtx * xtx)
        hsic_pp = jnp.sum(ptp * ptp)
        coef = 2.0 / (jnp.sqrt(hsic_xx) * jnp.sqrt(hsic_pp))
        deriv = coef * (pc @ ptx - (hsic_xp / hsic_xx) * (xc @ xtx))
        return xb + gamma * deriv
    return jax.vmap(one)(x)


if __name__ == "__main__":
    B, N, D, C = 2, 8, 32, 4
    gamma = 1.0

    key = jax.random.PRNGKey(0)
    kx, kw, kb = jax.random.split(key, 3)

    x = jax.random.normal(kx, (B, N, D), dtype=jnp.float32)
    # Deterministic Linear(D, C) init (PyTorch-style uniform bound 1/sqrt(D))
    bound = 1.0 / jnp.sqrt(jnp.float32(D))
    w = jax.random.uniform(kw, (D, C), minval=-bound, maxval=bound,
                           dtype=jnp.float32)
    b = jax.random.uniform(kb, (C,), minval=-bound, maxval=bound,
                           dtype=jnp.float32)

    ref = _reference(x, w, b, gamma=gamma)

    # f32 MXU-operand mode: tight check against the pure-JAX reference.
    out_f32 = jax.block_until_ready(
        compression_annilation(x, w, b, gamma=gamma, mxu_dtype=jnp.float32))
    assert out_f32.shape == (B, N, D)
    assert jnp.allclose(out_f32, ref, atol=1e-4, rtol=1e-4), \
        "f32 kernel mismatch vs reference"

    # Default fast path: bf16 MXU operands, f32 accumulation. Looser tolerance.
    out_bf16 = jax.block_until_ready(
        compression_annilation(x, w, b, gamma=gamma))
    assert out_bf16.shape == (B, N, D)
    assert jnp.allclose(out_bf16, ref, atol=5e-3, rtol=5e-3), \
        "bf16 kernel mismatch vs reference"

    print("KERNEL_OK")
</pallas_src>

<mosaic_0001>
module attributes {stable_mosaic.version = 11 : i64} {
  func.func @_cka_annihilation_kernel(%arg0: i32, %arg1: memref<1x8x32xf32, #tpu.memory_space<vmem>>, %arg2: memref<32x4xf32, #tpu.memory_space<vmem>>, %arg3: memref<1x4xf32, #tpu.memory_space<vmem>>, %arg4: memref<1x8x32xf32, #tpu.memory_space<vmem>>) attributes {dimension_semantics = [#tpu.dimension_semantics<parallel>], iteration_bounds = array<i64: 2>, scalar_prefetch = 0 : i64, scratch_operands = 0 : i64, tpu.core_type = #tpu.core_type<tc>, window_params = [{transform_indices = @transform_0, window_bounds = array<i64: 1, 8, 32>}, {pipeline_mode = #tpu.pipeline_mode<synchronous>, transform_indices = @transform_1, window_bounds = array<i64: 32, 4>}, {pipeline_mode = #tpu.pipeline_mode<synchronous>, transform_indices = @transform_2, window_bounds = array<i64: 1, 4>}, {transform_indices = @transform_3, window_bounds = array<i64: 1, 8, 32>}]} {
    %c0 = arith.constant 0 : index
    %c0_0 = arith.constant 0 : index
    %c0_1 = arith.constant 0 : index
    %0 = vector.load %arg1[%c0, %c0_0, %c0_1] : memref<1x8x32xf32, #tpu.memory_space<vmem>>, vector<1x8x32xf32>
    %1 = vector.shape_cast %0 : vector<1x8x32xf32> to vector<8x32xf32>
    %c0_2 = arith.constant 0 : index
    %c0_3 = arith.constant 0 : index
    %2 = vector.load %arg2[%c0_2, %c0_3] : memref<32x4xf32, #tpu.memory_space<vmem>>, vector<32x4xf32>
    %c0_4 = arith.constant 0 : index
    %c0_5 = arith.constant 0 : index
    %3 = vector.load %arg3[%c0_4, %c0_5] : memref<1x4xf32, #tpu.memory_space<vmem>>, vector<1x4xf32>
    %cst = arith.constant dense<0.000000e+00> : vector<8x4xf32>
    %4 = tpu.matmul %1, %2, %cst {dimension_numbers = #tpu.dot_dimension_numbers<[1], [0], [0], [1], [0, 0, 1, 1], [], []>} : vector<8x32xf32>, vector<32x4xf32>, vector<8x4xf32> -> vector<8x4xf32>
    %5 = vector.broadcast %3 : vector<1x4xf32> to vector<8x4xf32>
    %6 = arith.addf %4, %5 : vector<8x4xf32>
    %cst_6 = arith.constant dense<0xFF800000> : vector<8xf32>
    %7 = vector.multi_reduction <maximumf>, %6, %cst_6 [1] : vector<8x4xf32> to vector<8xf32>
    %8 = vector.shape_cast %7 : vector<8xf32> to vector<8x1xf32>
    %9 = vector.broadcast %8 : vector<8x1xf32> to vector<8x4xf32>
    %10 = arith.subf %6, %9 : vector<8x4xf32>
    %11 = math.exp %10 : vector<8x4xf32>
    %cst_7 = arith.constant dense<0.000000e+00> : vector<8xf32>
    %12 = vector.multi_reduction <add>, %11, %cst_7 [1] : vector<8x4xf32> to vector<8xf32>
    %13 = vector.shape_cast %12 : vector<8xf32> to vector<8x1xf32>
    %14 = vector.broadcast %13 : vector<8x1xf32> to vector<8x4xf32>
    %15 = arith.divf %11, %14 : vector<8x4xf32>
    %cst_8 = arith.constant dense<0.000000e+00> : vector<32xf32>
    %16 = vector.multi_reduction <add>, %1, %cst_8 [0] : vector<8x32xf32> to vector<32xf32>
    %17 = vector.shape_cast %16 : vector<32xf32> to vector<1x32xf32>
    %cst_9 = arith.constant 8.000000e+00 : f32
    %18 = vector.broadcast %cst_9 : f32 to vector<1x32xf32>
    %19 = arith.divf %17, %18 : vector<1x32xf32>
    %cst_10 = arith.constant dense<0.000000e+00> : vector<4xf32>
    %20 = vector.multi_reduction <add>, %15, %cst_10 [0] : vector<8x4xf32> to vector<4xf32>
    %21 = vector.shape_cast %20 : vector<4xf32> to vector<1x4xf32>
    %cst_11 = arith.constant 8.000000e+00 : f32
    %22 = vector.broadcast %cst_11 : f32 to vector<1x4xf32>
    %23 = arith.divf %21, %22 : vector<1x4xf32>
    %24 = vector.broadcast %19 : vector<1x32xf32> to vector<8x32xf32>
    %25 = arith.subf %1, %24 : vector<8x32xf32>
    %26 = vector.broadcast %23 : vector<1x4xf32> to vector<8x4xf32>
    %27 = arith.subf %15, %26 : vector<8x4xf32>
    %cst_12 = arith.constant dense<0.000000e+00> : vector<32x32xf32>
    %28 = tpu.matmul %25, %25, %cst_12 {dimension_numbers = #tpu.dot_dimension_numbers<[0], [0], [1], [1], [0, 1, 1, 1], [], []>} : vector<8x32xf32>, vector<8x32xf32>, vector<32x32xf32> -> vector<32x32xf32>
    %cst_13 = arith.constant dense<0.000000e+00> : vector<4x32xf32>
    %29 = tpu.matmul %27, %25, %cst_13 {dimension_numbers = #tpu.dot_dimension_numbers<[0], [0], [1], [1], [0, 1, 1, 1], [], []>} : vector<8x4xf32>, vector<8x32xf32>, vector<4x32xf32> -> vector<4x32xf32>
    %cst_14 = arith.constant dense<0.000000e+00> : vector<4x4xf32>
    %30 = tpu.matmul %27, %27, %cst_14 {dimension_numbers = #tpu.dot_dimension_numbers<[0], [0], [1], [1], [0, 1, 1, 1], [], []>} : vector<8x4xf32>, vector<8x4xf32>, vector<4x4xf32> -> vector<4x4xf32>
    %31 = arith.mulf %29, %29 : vector<4x32xf32>
    %32 = vector.shape_cast %31 : vector<4x32xf32> to vector<1x4x32xf32>
    %cst_15 = arith.constant dense<0.000000e+00> : vector<1xf32>
    %33 = vector.multi_reduction <add>, %32, %cst_15 [1, 2] : vector<1x4x32xf32> to vector<1xf32>
    %34 = vector.shape_cast %33 : vector<1xf32> to vector<1x1x1xf32>
    %35 = vector.extract %34[0, 0, 0] : f32 from vector<1x1x1xf32>
    %36 = arith.mulf %28, %28 : vector<32x32xf32>
    %37 = vector.shape_cast %36 : vector<32x32xf32> to vector<1x32x32xf32>
    %cst_16 = arith.constant dense<0.000000e+00> : vector<1xf32>
    %38 = vector.multi_reduction <add>, %37, %cst_16 [1, 2] : vector<1x32x32xf32> to vector<1xf32>
    %39 = vector.shape_cast %38 : vector<1xf32> to vector<1x1x1xf32>
    %40 = vector.extract %39[0, 0, 0] : f32 from vector<1x1x1xf32>
    %41 = arith.mulf %30, %30 : vector<4x4xf32>
    %42 = vector.shape_cast %41 : vector<4x4xf32> to vector<1x4x4xf32>
    %cst_17 = arith.constant dense<0.000000e+00> : vector<1xf32>
    %43 = vector.multi_reduction <add>, %42, %cst_17 [1, 2] : vector<1x4x4xf32> to vector<1xf32>
    %44 = vector.shape_cast %43 : vector<1xf32> to vector<1x1x1xf32>
    %45 = vector.extract %44[0, 0, 0] : f32 from vector<1x1x1xf32>
    %cst_18 = arith.constant dense<0.000000e+00> : vector<8x32xf32>
    %46 = tpu.matmul %27, %29, %cst_18 {dimension_numbers = #tpu.dot_dimension_numbers<[1], [0], [0], [1], [0, 0, 1, 1], [], []>} : vector<8x4xf32>, vector<4x32xf32>, vector<8x32xf32> -> vector<8x32xf32>
    %cst_19 = arith.constant dense<0.000000e+00> : vector<8x32xf32>
    %47 = tpu.matmul %25, %28, %cst_19 {dimension_numbers = #tpu.dot_dimension_numbers<[1], [0], [0], [1], [0, 0, 1, 1], [], []>} : vector<8x32xf32>, vector<32x32xf32>, vector<8x32xf32> -> vector<8x32xf32>
    %48 = math.sqrt %40 : f32
    %49 = math.sqrt %45 : f32
    %50 = arith.mulf %48, %49 : f32
    %cst_20 = arith.constant 9.99999996E-13 : f32
    %51 = arith.addf %50, %cst_20 : f32
    %cst_21 = arith.constant 2.000000e+00 : f32
    %52 = arith.divf %cst_21, %51 : f32
    %53 = arith.mulf %52, %35 : f32
    %cst_22 = arith.constant 9.99999996E-13 : f32
    %54 = arith.addf %40, %cst_22 : f32
    %55 = arith.divf %53, %54 : f32
    %56 = vector.broadcast %52 : f32 to vector<8x32xf32>
    %57 = arith.mulf %56, %46 : vector<8x32xf32>
    %58 = arith.addf %1, %57 : vector<8x32xf32>
    %59 = vector.broadcast %55 : f32 to vector<8x32xf32>
    %60 = arith.mulf %59, %47 : vector<8x32xf32>
    %61 = arith.subf %58, %60 : vector<8x32xf32>
    %c0_23 = arith.constant 0 : index
    %c0_24 = arith.constant 0 : index
    %c0_25 = arith.constant 0 : index
    %62 = vector.load %arg4[%c0_23, %c0_24, %c0_25] : memref<1x8x32xf32, #tpu.memory_space<vmem>>, vector<1x8x32xf32>
    %63 = vector.shape_cast %62 : vector<1x8x32xf32> to vector<8x32xf32>
    %64 = vector.shape_cast %61 : vector<8x32xf32> to vector<1x8x32xf32>
    tpu.vector_store %arg4[%c0_23, %c0_24, %c0_25], %64 {strides = array<i32>} : memref<1x8x32xf32, #tpu.memory_space<vmem>>, vector<1x8x32xf32>,
    return
  }
  func.func @transform_0(%arg0: i32) -> (i32, i32, i32) {
    %c0_i32 = arith.constant 0 : i32
    %c0_i32_0 = arith.constant 0 : i32
    %c0_i32_1 = arith.constant 0 : i32
    return %arg0, %c0_i32, %c0_i32_0 : i32, i32, i32
  }
  func.func @transform_1(%arg0: i32) -> (i32, i32) {
    %c0_i32 = arith.constant 0 : i32
    %c0_i32_0 = arith.constant 0 : i32
    %c0_i32_1 = arith.constant 0 : i32
    return %c0_i32, %c0_i32_0 : i32, i32
  }
  func.func @transform_2(%arg0: i32) -> (i32, i32) {
    %c0_i32 = arith.constant 0 : i32
    %c0_i32_0 = arith.constant 0 : i32
    %c0_i32_1 = arith.constant 0 : i32
    return %c0_i32, %c0_i32_0 : i32, i32
  }
  func.func @transform_3(%arg0: i32) -> (i32, i32, i32) {
    %c0_i32 = arith.constant 0 : i32
    %c0_i32_0 = arith.constant 0 : i32
    %c0_i32_1 = arith.constant 0 : i32
    return %arg0, %c0_i32, %c0_i32_0 : i32, i32, i32
  }
}

</mosaic_0001>

<llo_original>
// kernel: tpu_custom_call.1
$region0: #{tpu_custom_call.1}
  #allocation0 [shape = 'u32[]', space=smem, size = 0x4, offset = 0x4, fixed_abs, tag = 'smem constant byte address 0x4 - core index']
  #allocation1 [shape = 'u32[144,128]{1,0:T(1,128)}', space=vmem, size = 0x12000, scoped, tag = 'internal scratch']
  %s0 = inlined_call_operand.vmem [shape: f32[2,8,32], index: 0, kind: input, shape index: {}]
  %s1 = inlined_call_operand.vmem [shape: f32[32,4], index: 1, kind: input, shape index: {}]
  %s2 = inlined_call_operand.vmem [shape: f32[1,4], index: 2, kind: input, shape index: {}]
  %s3 = inlined_call_operand.hbm [shape: f32[2,8,32], index: 3, kind: output, shape index: {}]
  %s4 = sld [smem:[#allocation0]]
  $region45: #{tpu_custom_call.1} parent=0
    _
  %s6 = ssub.s32 1, %s4
  %s7 = scalar_select 0, %s6, %s4
  $region1: #{tpu_custom_call.1} parent=0
    #allocation2 [shape = 'u8[8192]{0}', space=vmem, size = 0x2000, scoped, tag = 'output window, operand 0']
    #allocation3 [shape = 's32[2]{0}', space=sflag, size = 0x8, scoped, tag = 'scoped memory for tpu_custom_call.1']
    %8 = vsyncpa [#allocation3], 0
    %s9 = scalar_lea.sflag [#allocation3], 1
    %10 = vsyncpa %s9, 0
    loop: start=0, step=1, limit=4
    $region2: #{tpu_custom_call.1} parent=1 // loop_pre_header
      _
    $region3: #{tpu_custom_call.1} parent=1 // loop_header
      %s12 = sphi 0, %s16
      %p13 = scmp.ge.s32.totalorder %s12, 4
      %s22 = sphi 0, %s24
      %s25 = sphi 0, %s22
      %s26 = sphi 0, %s25
      %s42 = sphi 0, %s26
      %s46 = sphi 0, %s46
      %s48 = sphi 0, %s46
      %s49 = sphi 0, %s48
      %s63 = sphi 0, %s49
      %s67 = sphi 0, %s67
      %s69 = sphi 0, %s67
      %s70 = sphi 0, %s69
      %s84 = sphi 0, %s70
      %s90 = sphi 0, %s92
      %s93 = sphi 0, %s90
      %s94 = sphi 0, %s93
      %s110 = sphi 0, %s94
    $region4: #{tpu_custom_call.1} parent=1 // loop_header_branch
      %15 = sbr.rel (%p13) target = $region8
    $region5: #{tpu_custom_call.1} parent=1 // loop_body
      %s17 = ssub.s32 %s12, 1
      %s18 = ssub.s32 %s12, 2
      %s19 = sadd.s32 %s12, 1
      %s20 = ssub.s32 %s12, %s19
      %p21 = scmp.eq.s32.totalorder %s20, 0
      %s23 = sadd.s32 %s22, 1
      %s24 = scalar_select %p21, %s22, %s23
      %p27 = pneg %p21
      %p28 = scmp.eq.s32.totalorder %s12, 1
      %p29 = por %p27, %p28
      %p30 = scmp.ne.s32.totalorder %s22, %s25
      %p31 = scmp.eq.s32.totalorder %s12, 0
      %p32 = por %p30, %p31
      %p33 = scmp.ne.s32.totalorder %s22, %s25
      %p34 = scmp.eq.s32.totalorder %s17, 1
      %p35 = por %p33, %p34
      %p36 = scmp.ne.s32.totalorder %s25, %s26
      %p37 = scmp.eq.s32.totalorder %s17, 0
      %p38 = por %p36, %p37
      %p39 = scmp.ne.s32.totalorder %s25, %s26
      %p40 = scmp.eq.s32.totalorder %s18, 1
      %p41 = por %p39, %p40
      %p43 = scmp.ne.s32.totalorder %s26, %s42
      %p44 = scmp.eq.s32.totalorder %s18, 0
      %p45 = por %p43, %p44
      %s47 = sadd.s32 %s46, 1
      %p50 = scmp.eq.s32.totalorder %s12, 1
      %p51 = scmp.ne.s32.totalorder %s46, %s48
      %p52 = scmp.eq.s32.totalorder %s12, 0
      %p53 = por %p51, %p52
      %p54 = scmp.ne.s32.totalorder %s46, %s48
      %p55 = scmp.eq.s32.totalorder %s17, 1
      %p56 = por %p54, %p55
      %p57 = scmp.ne.s32.totalorder %s48, %s49
      %p58 = scmp.eq.s32.totalorder %s17, 0
      %p59 = por %p57, %p58
      %p60 = scmp.ne.s32.totalorder %s48, %s49
      %p61 = scmp.eq.s32.totalorder %s18, 1
      %p62 = por %p60, %p61
      %p64 = scmp.ne.s32.totalorder %s49, %s63
      %p65 = scmp.eq.s32.totalorder %s18, 0
      %p66 = por %p64, %p65
      %s68 = sadd.s32 %s67, 1
      %p71 = scmp.eq.s32.totalorder %s12, 1
      %p72 = scmp.ne.s32.totalorder %s67, %s69
      %p73 = scmp.eq.s32.totalorder %s12, 0
      %p74 = por %p72, %p73
      %p75 = scmp.ne.s32.totalorder %s67, %s69
      %p76 = scmp.eq.s32.totalorder %s17, 1
      %p77 = por %p75, %p76
      %p78 = scmp.ne.s32.totalorder %s69, %s70
      %p79 = scmp.eq.s32.totalorder %s17, 0
      %p80 = por %p78, %p79
      %p81 = scmp.ne.s32.totalorder %s69, %s70
      %p82 = scmp.eq.s32.totalorder %s18, 1
      %p83 = por %p81, %p82
      %p85 = scmp.ne.s32.totalorder %s70, %s84
      %p86 = scmp.eq.s32.totalorder %s18, 0
      %p87 = por %p85, %p86
      %s88 = ssub.s32 %s12, %s19
      %p89 = scmp.eq.s32.totalorder %s88, 0
      %s91 = sadd.s32 %s90, 1
      %s92 = scalar_select %p89, %s90, %s91
      %p95 = pneg %p89
      %p96 = scmp.eq.s32.totalorder %s12, 1
      %p97 = por %p95, %p96
      %p98 = scmp.ne.s32.totalorder %s90, %s93
      %p99 = scmp.eq.s32.totalorder %s12, 0
      %p100 = por %p98, %p99
      %p101 = scmp.ne.s32.totalorder %s90, %s93
      %p102 = scmp.eq.s32.totalorder %s17, 1
      %p103 = por %p101, %p102
      %p104 = scmp.ne.s32.totalorder %s93, %s94
      %p105 = scmp.eq.s32.totalorder %s17, 0
      %p106 = por %p104, %p105
      %p107 = scmp.ne.s32.totalorder %s93, %s94
      %p108 = scmp.eq.s32.totalorder %s18, 1
      %p109 = por %p107, %p108
      %p111 = scmp.ne.s32.totalorder %s94, %s110
      %p112 = scmp.eq.s32.totalorder %s18, 0
      %p113 = por %p111, %p112
      %p114 = scmp.le.s32.totalorder 1, %s12
      %p115 = scmp.lt.s32.totalorder %s12, 3
      %p116 = pnand %p114, %p115
      %p117 = pneg %p116
      // Predicated region
      $region9: #{tpu_custom_call.1} parent=5 // pred_check
        _
      $region10: #{tpu_custom_call.1} parent=5 // pred_check_branch
        %119 = sbr.rel (%p116) target = $region12
      $region11: #{tpu_custom_call.1} parent=5 // pred_region
        %s120 = ssub.s32 %s12, 1
        // Predicated region
        $region13: #{tpu_custom_call.1} parent=11 // pred_check
          %p121 = pneg %p59
        $region14: #{tpu_custom_call.1} parent=11 // pred_check_branch
          %123 = sbr.rel (%p121) target = $region16
        $region15: #{tpu_custom_call.1} parent=11 // pred_region
          _
        $region16: #{tpu_custom_call.1} parent=11 // pred_fallthru
          _
        // Predicated region
        $region17: #{tpu_custom_call.1} parent=11 // pred_check
          %p124 = pneg %p80
        $region18: #{tpu_custom_call.1} parent=11 // pred_check_branch
          %126 = sbr.rel (%p124) target = $region20
        $region19: #{tpu_custom_call.1} parent=11 // pred_region
          _
        $region20: #{tpu_custom_call.1} parent=11 // pred_fallthru
          _
      $region12: #{tpu_custom_call.1} parent=5 // pred_fallthru
        _
      %p127 = scmp.lt.s32.totalorder %s12, 2
      // Predicated region
      $region21: #{tpu_custom_call.1} parent=5 // pred_check
        %p128 = pneg %p127
      $region22: #{tpu_custom_call.1} parent=5 // pred_check_branch
        %130 = sbr.rel (%p128) target = $region24
      $region23: #{tpu_custom_call.1} parent=5 // pred_region
        // Predicated region
        $region25: #{tpu_custom_call.1} parent=23 // pred_check
          %p131 = pneg %p32
        $region26: #{tpu_custom_call.1} parent=23 // pred_check_branch
          %133 = sbr.rel (%p131) target = $region28
        $region27: #{tpu_custom_call.1} parent=23 // pred_region
          %p134 = scmp.lt.s32.totalorder %s12, 1
          %s135 = scalar_select %p134, %s12, 1
          %s136 = smul.addr %s135, 8
          %s137 = scalar_lea.vmem %s0, %s136
        $region28: #{tpu_custom_call.1} parent=23 // pred_fallthru
          _
      $region24: #{tpu_custom_call.1} parent=5 // pred_fallthru
        _
      %p138 = scmp.le.s32.totalorder 1, %s12
      %p139 = scmp.lt.s32.totalorder %s12, 3
      %p140 = pnand %p138, %p139
      %p141 = pneg %p140
      // Predicated region
      $region29: #{tpu_custom_call.1} parent=5 // pred_check
        _
      $region30: #{tpu_custom_call.1} parent=5 // pred_check_branch
        %143 = sbr.rel (%p140) target = $region32
      $region31: #{tpu_custom_call.1} parent=5 // pred_region
        %s144 = ssub.s32 %s12, 1
        %p145 = scmp.lt.s32.totalorder %s17, 1
        %s146 = scalar_select %p145, %s17, 1
        %s147 = smul.addr %s146, 8
        %s148 = scalar_lea.vmem %s0, %s147
        %p149 = pneg %p38
        %p150 = pneg %p35
        %p151 = pneg %p59
        %p152 = pneg %p56
        %p153 = pneg %p80
        %p154 = pneg %p77
        %p155 = pneg %p106
        %p156 = pneg %p103
        %s157 = sand.u32 %s93, 1
        %s158 = scalar_lea.sflag [#allocation3], %s157
        %s159 = sand.u32 %s93, 1
        %s160 = smul.addr %s159, 8
        %s161 = scalar_lea.vmem [#allocation2], %s160
        %p162 = scmp.lt.s32.totalorder %s17, 1
        %s163 = scalar_select %p162, %s17, 1
        %s164 = smul.addr %s163, 8
        %s165 = scalar_lea.vmem %s0, %s164
        %v166 = vld [vmem:[%s165] sm:$0xff]
        %v167 = vld [vmem:[%s1] sm:$0xff]
        %v168 = vld [vmem:[%s1 + $0x8] sm:$0xff]
        %v169 = vld [vmem:[%s1 + $0x10] sm:$0xff]
        %v170 = vld [vmem:[%s1 + $0x18] sm:$0xff]
        %v171 = vld [vmem:[%s2] sm:$0x1]
        %v173 = vlaneseq
        %v174 = vshrl.u32 %v173, 7
        %v175 = vsub.s32 0, %v174
        %v176 = vrot.slane %v171, %v175
        %vm178 = vcmask 261120
        %v180 = vsel %vm178, %v166, 0
        %182 = vmatprep.subr.mxu0 0.0
        %183 = vmatpush1.msra.mxu0 %v167
        %184 = vmatprep.subr.mxu0 0.0
        %185 = vmatpush1.msra.mxu0 %v168
        %186 = vmatprep.subr.mxu0 0.0
        %187 = vmatpush1.msra.mxu0 %v169
        %188 = vmatprep.subr.mxu0 0.0
        %189 = vmatpush1.msra.mxu0 %v170
        %190 = vmatprep.subr.mxu0 0.0
        %191 = vmatpush1.msra.mxu0 0.0
        %192 = vmatprep.subr.mxu0 0.0
        %193 = vmatpush1.msra.mxu0 0.0
        %194 = vmatprep.subr.mxu0 0.0
        %195 = vmatpush1.msra.mxu0 0.0
        %196 = vmatprep.subr.mxu0 0.0
        %197 = vmatpush1.msra.mxu0 0.0
        %198 = vmatprep.subr.mxu0 0.0
        %199 = vmatpush1.msra.mxu0 0.0
        %200 = vmatprep.subr.mxu0 0.0
        %201 = vmatpush1.msra.mxu0 0.0
        %202 = vmatprep.subr.mxu0 0.0
        %203 = vmatpush1.msra.mxu0 0.0
        %204 = vmatprep.subr.mxu0 0.0
        %205 = vmatpush1.msra.mxu0 0.0
        %206 = vmatprep.subr.mxu0 0.0
        %207 = vmatpush1.msra.mxu0 0.0
        %208 = vmatprep.subr.mxu0 0.0
        %209 = vmatpush1.msra.mxu0 0.0
        %210 = vmatprep.subr.mxu0 0.0
        %211 = vmatpush1.msra.mxu0 0.0
        %212 = vmatprep.subr.mxu0 0.0
        %213 = vmatpush1.msra.mxu0 0.0
        %214 = vmatprep.subr.mxu0 0.0
        %215 = vmatpush1.msra.mxu0 0.0
        %216 = vmatprep.subr.mxu0 0.0
        %217 = vmatpush1.msra.mxu0 0.0
        %218 = vmatprep.subr.mxu0 0.0
        %219 = vmatpush1.msra.mxu0 0.0
        %220 = vmatprep.subr.mxu0 0.0
        %221 = vmatpush1.msra.mxu0 0.0
        %222 = vmatprep.subr.mxu0 0.0
        %223 = vmatpush1.msra.mxu0 0.0
        %224 = vmatprep.subr.mxu0 0.0
        %225 = vmatpush1.msra.mxu0 0.0
        %226 = vmatprep.subr.mxu0 0.0
        %227 = vmatpush1.msra.mxu0 0.0
        %228 = vmatprep.subr.mxu0 0.0
        %229 = vmatpush1.msra.mxu0 0.0
        %230 = vmatprep.subr.mxu0 0.0
        %231 = vmatpush1.msra.mxu0 0.0
        %232 = vmatprep.subr.mxu0 0.0
        %233 = vmatpush1.msra.mxu0 0.0
        %234 = vmatprep.subr.mxu0 0.0
        %235 = vmatpush1.msra.mxu0 0.0
        %236 = vmatprep.subr.mxu0 0.0
        %237 = vmatpush1.msra.mxu0 0.0
        %238 = vmatprep.subr.mxu0 0.0
        %239 = vmatpush1.msra.mxu0 0.0
        %240 = vmatprep.subr.mxu0 0.0
        %241 = vmatpush1.msra.mxu0 0.0
        %242 = vmatprep.subr.mxu0 0.0
        %243 = vmatpush1.msra.mxu0 0.0
        %244 = vmatprep.subr.mxu0 0.0
        %245 = vmatpush1.msra.mxu0 0.0
        %246 = vmatprep.mubr.f32.mxu0 0.0
        %247 = vmatmul.mubr.f32.gmra.mrb[0].mxu0 %v180
        %v248 = vpop.f32.mrb[0].mxu0
        %v249 = vadd.f32 %v176, %v248
        %v250 = vpop.f32.mrb[0].mxu0
        %251 = vdwg.mxu0
        %vm252 = vcmask 31744
        %v253 = vsel %vm252, %v249, -inf
        %254 = vmax.xlane.f32.xlu0 %v253
        %v255 = vpop.xlane.xlu0 %254
        %v256 = vsub.f32 %v249, %v255
        %v257 = vmul.f32 %v256, 1.442695
        %v258 = vpow.pop %v257
        %v259 = vsel %vm252, %v258, 0.0
        %260 = vadd.xlane.f32.xlu0 %v259
        %v261 = vpop.xlane.xlu0 %260
        %v262 = vrcp.pop %v261
        %v263 = vmul.f32 %v258, %v262
        %v264 = vsel %vm178, %v166, 0.0
        %v265 = vrot.slane %v264, 4
        %v266 = vadd.f32 %v264, %v265
        %v267 = vrot.slane %v266, 2
        %v268 = vadd.f32 %v266, %v267
        %v269 = vrot.slane %v268, 1
        %v270 = vadd.f32 %v268, %v269
        %v271 = vrcp.pop 8.0
        %v272 = vmul.f32 %v270, %v271
        %v273 = vsel %vm252, %v263, 0.0
        %v274 = vrot.slane %v273, 4
        %v275 = vadd.f32 %v273, %v274
        %v276 = vrot.slane %v275, 2
        %v277 = vadd.f32 %v275, %v276
        %v278 = vrot.slane %v277, 1
        %v279 = vadd.f32 %v277, %v278
        %v280 = vmul.f32 %v279, %v271
        %v281 = vsub.f32 %v166, %v272
        %v282 = vsub.f32 %v263, %v280
        %283 = vxpose.xlu0.b32.start [1/16] %v281, 128
        %284 = vxpose.xlu0.b32.cont [2/16] 0.0, 128
        %285 = vxpose.xlu0.b32.cont [3/16] 0.0, 128
        %286 = vxpose.xlu0.b32.cont [4/16] 0.0, 128
        %287 = vxpose.xlu0.b32.cont [5/16] 0.0, 128
        %288 = vxpose.xlu0.b32.cont [6/16] 0.0, 128
        %289 = vxpose.xlu0.b32.cont [7/16] 0.0, 128
        %290 = vxpose.xlu0.b32.cont [8/16] 0.0, 128
        %291 = vxpose.xlu0.b32.cont [9/16] 0.0, 128
        %292 = vxpose.xlu0.b32.cont [10/16] 0.0, 128
        %293 = vxpose.xlu0.b32.cont [11/16] 0.0, 128
        %294 = vxpose.xlu0.b32.cont [12/16] 0.0, 128
        %295 = vxpose.xlu0.b32.cont [13/16] 0.0, 128
        %296 = vxpose.xlu0.b32.cont [14/16] 0.0, 128
        %297 = vxpose.xlu0.b32.cont [15/16] 0.0, 128
        %298 = vxpose.xlu0.b32.end [16/16] 0.0, 128
        %v299 = vpop.trf.xlu0
        %v300 = vpop.trf.xlu0
        %v301 = vpop.trf.xlu0
        %v302 = vpop.trf.xlu0
        %v303 = vpop.trf.xlu0
        %v304 = vpop.trf.xlu0
        %v305 = vpop.trf.xlu0
        %v306 = vpop.trf.xlu0
        %v307 = vpop.trf.xlu0
        %v308 = vpop.trf.xlu0
        %v309 = vpop.trf.xlu0
        %v310 = vpop.trf.xlu0
        %v311 = vpop.trf.xlu0
        %v312 = vpop.trf.xlu0
        %v313 = vpop.trf.xlu0
        %v314 = vpop.trf.xlu0
        %vm315 = vcmask 64512
        %v317 = vsel %vm315, %v299, 0
        %v320 = vsel %vm315, %v300, 0
        %v323 = vsel %vm315, %v301, 0
        %v326 = vsel %vm315, %v302, 0
        %328 = vmatprep.subr.mxu0 0.0
        %329 = vmatpush1.msra.mxu0 %v281
        %330 = vmatprep.subr.mxu0 0.0
        %331 = vmatpush1.msra.mxu0 0.0
        %332 = vmatprep.subr.mxu0 0.0
        %333 = vmatpush1.msra.mxu0 0.0
        %334 = vmatprep.subr.mxu0 0.0
        %335 = vmatpush1.msra.mxu0 0.0
        %336 = vmatprep.subr.mxu0 0.0
        %337 = vmatpush1.msra.mxu0 0.0
        %338 = vmatprep.subr.mxu0 0.0
        %339 = vmatpush1.msra.mxu0 0.0
        %340 = vmatprep.subr.mxu0 0.0
        %341 = vmatpush1.msra.mxu0 0.0
        %342 = vmatprep.subr.mxu0 0.0
        %343 = vmatpush1.msra.mxu0 0.0
        %344 = vmatprep.subr.mxu0 0.0
        %345 = vmatpush1.msra.mxu0 0.0
        %346 = vmatprep.subr.mxu0 0.0
        %347 = vmatpush1.msra.mxu0 0.0
        %348 = vmatprep.subr.mxu0 0.0
        %349 = vmatpush1.msra.mxu0 0.0
        %350 = vmatprep.subr.mxu0 0.0
        %351 = vmatpush1.msra.mxu0 0.0
        %352 = vmatprep.subr.mxu0 0.0
        %353 = vmatpush1.msra.mxu0 0.0
        %354 = vmatprep.subr.mxu0 0.0
        %355 = vmatpush1.msra.mxu0 0.0
        %356 = vmatprep.subr.mxu0 0.0
        %357 = vmatpush1.msra.mxu0 0.0
        %358 = vmatprep.subr.mxu0 0.0
        %359 = vmatpush1.msra.mxu0 0.0
        %360 = vmatprep.subr.mxu0 0.0
        %361 = vmatpush1.msra.mxu0 0.0
        %362 = vmatprep.subr.mxu0 0.0
        %363 = vmatpush1.msra.mxu0 0.0
        %364 = vmatprep.subr.mxu0 0.0
        %365 = vmatpush1.msra.mxu0 0.0
        %366 = vmatprep.subr.mxu0 0.0
        %367 = vmatpush1.msra.mxu0 0.0
        %368 = vmatprep.subr.mxu0 0.0
        %369 = vmatpush1.msra.mxu0 0.0
        %370 = vmatprep.subr.mxu0 0.0
        %371 = vmatpush1.msra.mxu0 0.0
        %372 = vmatprep.subr.mxu0 0.0
        %373 = vmatpush1.msra.mxu0 0.0
        %374 = vmatprep.subr.mxu0 0.0
        %375 = vmatpush1.msra.mxu0 0.0
        %376 = vmatprep.subr.mxu0 0.0
        %377 = vmatpush1.msra.mxu0 0.0
        %378 = vmatprep.subr.mxu0 0.0
        %379 = vmatpush1.msra.mxu0 0.0
        %380 = vmatprep.subr.mxu0 0.0
        %381 = vmatpush1.msra.mxu0 0.0
        %382 = vmatprep.subr.mxu0 0.0
        %383 = vmatpush1.msra.mxu0 0.0
        %384 = vmatprep.subr.mxu0 0.0
        %385 = vmatpush1.msra.mxu0 0.0
        %386 = vmatprep.subr.mxu0 0.0
        %387 = vmatpush1.msra.mxu0 0.0
        %388 = vmatprep.subr.mxu0 0.0
        %389 = vmatpush1.msra.mxu0 0.0
        %390 = vmatprep.subr.mxu0 0.0
        %391 = vmatpush1.msra.mxu0 0.0
        %392 = vmatprep.mubr.f32.mxu0 0.0
        %393 = vmatmul.mubr.f32.gmra.mrb[0].mxu0 %v317
        %v394 = vpop.f32.mrb[0].mxu0
        %v395 = vadd.f32 0.0, %v394
        %v396 = vpop.f32.mrb[0].mxu0
        %397 = vmatprep.mubr.f32.mxu0 0.0
        %398 = vmatmul.mubr.f32.gmra.mrb[0].mxu0 %v320
        %v399 = vpop.f32.mrb[0].mxu0
        %v400 = vadd.f32 0.0, %v399
        %v401 = vpop.f32.mrb[0].mxu0
        %402 = vmatprep.mubr.f32.mxu0 0.0
        %403 = vmatmul.mubr.f32.gmra.mrb[0].mxu0 %v323
        %v404 = vpop.f32.mrb[0].mxu0
        %v405 = vadd.f32 0.0, %v404
        %v406 = vpop.f32.mrb[0].mxu0
        %407 = vmatprep.mubr.f32.mxu0 0.0
        %408 = vmatmul.mubr.f32.gmra.mrb[0].mxu0 %v326
        %v409 = vpop.f32.mrb[0].mxu0
        %v410 = vadd.f32 0.0, %v409
        %v411 = vpop.f32.mrb[0].mxu0
        %412 = vdwg.mxu0
        %413 = vxpose.xlu0.b32.start [1/16] %v282, 128
        %414 = vxpose.xlu0.b32.cont [2/16] 0.0, 128
        %415 = vxpose.xlu0.b32.cont [3/16] 0.0, 128
        %416 = vxpose.xlu0.b32.cont [4/16] 0.0, 128
        %417 = vxpose.xlu0.b32.cont [5/16] 0.0, 128
        %418 = vxpose.xlu0.b32.cont [6/16] 0.0, 128
        %419 = vxpose.xlu0.b32.cont [7/16] 0.0, 128
        %420 = vxpose.xlu0.b32.cont [8/16] 0.0, 128
        %421 = vxpose.xlu0.b32.cont [9/16] 0.0, 128
        %422 = vxpose.xlu0.b32.cont [10/16] 0.0, 128
        %423 = vxpose.xlu0.b32.cont [11/16] 0.0, 128
        %424 = vxpose.xlu0.b32.cont [12/16] 0.0, 128
        %425 = vxpose.xlu0.b32.cont [13/16] 0.0, 128
        %426 = vxpose.xlu0.b32.cont [14/16] 0.0, 128
        %427 = vxpose.xlu0.b32.cont [15/16] 0.0, 128
        %428 = vxpose.xlu0.b32.end [16/16] 0.0, 128
        %v429 = vpop.trf.xlu0
        %v430 = vpop.trf.xlu0
        %v431 = vpop.trf.xlu0
        %v432 = vpop.trf.xlu0
        %v433 = vpop.trf.xlu0
        %v434 = vpop.trf.xlu0
        %v435 = vpop.trf.xlu0
        %v436 = vpop.trf.xlu0
        %v437 = vpop.trf.xlu0
        %v438 = vpop.trf.xlu0
        %v439 = vpop.trf.xlu0
        %v440 = vpop.trf.xlu0
        %v441 = vpop.trf.xlu0
        %v442 = vpop.trf.xlu0
        %v443 = vpop.trf.xlu0
        %v444 = vpop.trf.xlu0
        %v446 = vsel %vm315, %v429, 0
        %448 = vmatprep.subr.mxu0 0.0
        %449 = vmatpush1.msra.mxu0 %v281
        %450 = vmatprep.subr.mxu0 0.0
        %451 = vmatpush1.msra.mxu0 0.0
        %452 = vmatprep.subr.mxu0 0.0
        %453 = vmatpush1.msra.mxu0 0.0
        %454 = vmatprep.subr.mxu0 0.0
        %455 = vmatpush1.msra.mxu0 0.0
        %456 = vmatprep.subr.mxu0 0.0
        %457 = vmatpush1.msra.mxu0 0.0
        %458 = vmatprep.subr.mxu0 0.0
        %459 = vmatpush1.msra.mxu0 0.0
        %460 = vmatprep.subr.mxu0 0.0
        %461 = vmatpush1.msra.mxu0 0.0
        %462 = vmatprep.subr.mxu0 0.0
        %463 = vmatpush1.msra.mxu0 0.0
        %464 = vmatprep.subr.mxu0 0.0
        %465 = vmatpush1.msra.mxu0 0.0
        %466 = vmatprep.subr.mxu0 0.0
        %467 = vmatpush1.msra.mxu0 0.0
        %468 = vmatprep.subr.mxu0 0.0
        %469 = vmatpush1.msra.mxu0 0.0
        %470 = vmatprep.subr.mxu0 0.0
        %471 = vmatpush1.msra.mxu0 0.0
        %472 = vmatprep.subr.mxu0 0.0
        %473 = vmatpush1.msra.mxu0 0.0
        %474 = vmatprep.subr.mxu0 0.0
        %475 = vmatpush1.msra.mxu0 0.0
        %476 = vmatprep.subr.mxu0 0.0
        %477 = vmatpush1.msra.mxu0 0.0
        %478 = vmatprep.subr.mxu0 0.0
        %479 = vmatpush1.msra.mxu0 0.0
        %480 = vmatprep.subr.mxu0 0.0
        %481 = vmatpush1.msra.mxu0 0.0
        %482 = vmatprep.subr.mxu0 0.0
        %483 = vmatpush1.msra.mxu0 0.0
        %484 = vmatprep.subr.mxu0 0.0
        %485 = vmatpush1.msra.mxu0 0.0
        %486 = vmatprep.subr.mxu0 0.0
        %487 = vmatpush1.msra.mxu0 0.0
        %488 = vmatprep.subr.mxu0 0.0
        %489 = vmatpush1.msra.mxu0 0.0
        %490 = vmatprep.subr.mxu0 0.0
        %491 = vmatpush1.msra.mxu0 0.0
        %492 = vmatprep.subr.mxu0 0.0
        %493 = vmatpush1.msra.mxu0 0.0
        %494 = vmatprep.subr.mxu0 0.0
        %495 = vmatpush1.msra.mxu0 0.0
        %496 = vmatprep.subr.mxu0 0.0
        %497 = vmatpush1.msra.mxu0 0.0
        %498 = vmatprep.subr.mxu0 0.0
        %499 = vmatpush1.msra.mxu0 0.0
        %500 = vmatprep.subr.mxu0 0.0
        %501 = vmatpush1.msra.mxu0 0.0
        %502 = vmatprep.subr.mxu0 0.0
        %503 = vmatpush1.msra.mxu0 0.0
        %504 = vmatprep.subr.mxu0 0.0
        %505 = vmatpush1.msra.mxu0 0.0
        %506 = vmatprep.subr.mxu0 0.0
        %507 = vmatpush1.msra.mxu0 0.0
        %508 = vmatprep.subr.mxu0 0.0
        %509 = vmatpush1.msra.mxu0 0.0
        %510 = vmatprep.subr.mxu0 0.0
        %511 = vmatpush1.msra.mxu0 0.0
        %512 = vmatprep.mubr.f32.mxu0 0.0
        %513 = vmatmul.mubr.f32.gmra.mrb[0].mxu0 %v446
        %v514 = vpop.f32.mrb[0].mxu0
        %v515 = vadd.f32 0.0, %v514
        %v516 = vpop.f32.mrb[0].mxu0
        %517 = vdwg.mxu0
        %518 = vmatprep.subr.mxu0 0.0
        %519 = vmatpush1.msra.mxu0 %v282
        %520 = vmatprep.subr.mxu0 0.0
        %521 = vmatpush1.msra.mxu0 0.0
        %522 = vmatprep.subr.mxu0 0.0
        %523 = vmatpush1.msra.mxu0 0.0
        %524 = vmatprep.subr.mxu0 0.0
        %525 = vmatpush1.msra.mxu0 0.0
        %526 = vmatprep.subr.mxu0 0.0
        %527 = vmatpush1.msra.mxu0 0.0
        %528 = vmatprep.subr.mxu0 0.0
        %529 = vmatpush1.msra.mxu0 0.0
        %530 = vmatprep.subr.mxu0 0.0
        %531 = vmatpush1.msra.mxu0 0.0
        %532 = vmatprep.subr.mxu0 0.0
        %533 = vmatpush1.msra.mxu0 0.0
        %534 = vmatprep.subr.mxu0 0.0
        %535 = vmatpush1.msra.mxu0 0.0
        %536 = vmatprep.subr.mxu0 0.0
        %537 = vmatpush1.msra.mxu0 0.0
        %538 = vmatprep.subr.mxu0 0.0
        %539 = vmatpush1.msra.mxu0 0.0
        %540 = vmatprep.subr.mxu0 0.0
        %541 = vmatpush1.msra.mxu0 0.0
        %542 = vmatprep.subr.mxu0 0.0
        %543 = vmatpush1.msra.mxu0 0.0
        %544 = vmatprep.subr.mxu0 0.0
        %545 = vmatpush1.msra.mxu0 0.0
        %546 = vmatprep.subr.mxu0 0.0
        %547 = vmatpush1.msra.mxu0 0.0
        %548 = vmatprep.subr.mxu0 0.0
        %549 = vmatpush1.msra.mxu0 0.0
        %550 = vmatprep.subr.mxu0 0.0
        %551 = vmatpush1.msra.mxu0 0.0
        %552 = vmatprep.subr.mxu0 0.0
        %553 = vmatpush1.msra.mxu0 0.0
        %554 = vmatprep.subr.mxu0 0.0
        %555 = vmatpush1.msra.mxu0 0.0
        %556 = vmatprep.subr.mxu0 0.0
        %557 = vmatpush1.msra.mxu0 0.0
        %558 = vmatprep.subr.mxu0 0.0
        %559 = vmatpush1.msra.mxu0 0.0
        %560 = vmatprep.subr.mxu0 0.0
        %561 = vmatpush1.msra.mxu0 0.0
        %562 = vmatprep.subr.mxu0 0.0
        %563 = vmatpush1.msra.mxu0 0.0
        %564 = vmatprep.subr.mxu0 0.0
        %565 = vmatpush1.msra.mxu0 0.0
        %566 = vmatprep.subr.mxu0 0.0
        %567 = vmatpush1.msra.mxu0 0.0
        %568 = vmatprep.subr.mxu0 0.0
        %569 = vmatpush1.msra.mxu0 0.0
        %570 = vmatprep.subr.mxu0 0.0
        %571 = vmatpush1.msra.mxu0 0.0
        %572 = vmatprep.subr.mxu0 0.0
        %573 = vmatpush1.msra.mxu0 0.0
        %574 = vmatprep.subr.mxu0 0.0
        %575 = vmatpush1.msra.mxu0 0.0
        %576 = vmatprep.subr.mxu0 0.0
        %577 = vmatpush1.msra.mxu0 0.0
        %578 = vmatprep.subr.mxu0 0.0
        %579 = vmatpush1.msra.mxu0 0.0
        %580 = vmatprep.subr.mxu0 0.0
        %581 = vmatpush1.msra.mxu0 0.0
        %582 = vmatprep.mubr.f32.mxu0 0.0
        %583 = vmatmul.mubr.f32.gmra.mrb[0].mxu0 %v446
        %v584 = vpop.f32.mrb[0].mxu0
        %v585 = vadd.f32 0.0, %v584
        %v586 = vpop.f32.mrb[0].mxu0
        %587 = vdwg.mxu0
        %v588 = vmul.f32 %v515, %v515
        %vm589 = vcmask 257024
        %v590 = vsel %vm589, %v588, 0.0
        %591 = vadd.xlane.f32.xlu0 %v590
        %v592 = vpop.xlane.xlu0 %591
        %v593 = vrot.slane %v592, 4
        %v594 = vadd.f32 %v592, %v593
        %v595 = vrot.slane %v594, 2
        %v596 = vadd.f32 %v594, %v595
        %v597 = vrot.slane %v596, 1
        %v598 = vadd.f32 %v596, %v597
        %s599 = vtos %v598
        %v600 = vmul.f32 %v395, %v395
        %v601 = vmul.f32 %v400, %v400
        %v602 = vmul.f32 %v405, %v405
        %v603 = vmul.f32 %v410, %v410
        %v604 = vsel %vm178, %v600, 0.0
        %v605 = vsel %vm178, %v601, 0.0
        %v606 = vadd.f32 %v604, %v605
        %v607 = vsel %vm178, %v602, 0.0
        %v608 = vadd.f32 %v606, %v607
        %v609 = vsel %vm178, %v603, 0.0
        %v610 = vadd.f32 %v608, %v609
        %611 = vadd.xlane.f32.xlu0 %v610
        %v612 = vpop.xlane.xlu0 %611
        %v613 = vrot.slane %v612, 4
        %v614 = vadd.f32 %v612, %v613
        %v615 = vrot.slane %v614, 2
        %v616 = vadd.f32 %v614, %v615
        %v617 = vrot.slane %v616, 1
        %v618 = vadd.f32 %v616, %v617
        %s619 = vtos %v618
        %v620 = vmul.f32 %v585, %v585
        %vm621 = vcmask 27648
        %v622 = vsel %vm621, %v620, 0.0
        %623 = vadd.xlane.f32.xlu0 %v622
        %v624 = vpop.xlane.xlu0 %623
        %v625 = vrot.slane %v624, 4
        %v626 = vadd.f32 %v624, %v625
        %v627 = vrot.slane %v626, 2
        %v628 = vadd.f32 %v626, %v627
        %v629 = vrot.slane %v628, 1
        %v630 = vadd.f32 %v628, %v629
        %s631 = vtos %v630
        %v633 = vsel %vm252, %v282, 0
        %vm635 = vcmask 1043456
        %v637 = vsel %vm635, %v515, 0
        %639 = vmatprep.subr.mxu0 0.0
        %640 = vmatpush1.msra.mxu0 %v637
        %641 = vmatprep.subr.mxu0 0.0
        %642 = vmatpush1.msra.mxu0 0.0
        %643 = vmatprep.subr.mxu0 0.0
        %644 = vmatpush1.msra.mxu0 0.0
        %645 = vmatprep.subr.mxu0 0.0
        %646 = vmatpush1.msra.mxu0 0.0
        %647 = vmatprep.subr.mxu0 0.0
        %648 = vmatpush1.msra.mxu0 0.0
        %649 = vmatprep.subr.mxu0 0.0
        %650 = vmatpush1.msra.mxu0 0.0
        %651 = vmatprep.subr.mxu0 0.0
        %652 = vmatpush1.msra.mxu0 0.0
        %653 = vmatprep.subr.mxu0 0.0
        %654 = vmatpush1.msra.mxu0 0.0
        %655 = vmatprep.subr.mxu0 0.0
        %656 = vmatpush1.msra.mxu0 0.0
        %657 = vmatprep.subr.mxu0 0.0
        %658 = vmatpush1.msra.mxu0 0.0
        %659 = vmatprep.subr.mxu0 0.0
        %660 = vmatpush1.msra.mxu0 0.0
        %661 = vmatprep.subr.mxu0 0.0
        %662 = vmatpush1.msra.mxu0 0.0
        %663 = vmatprep.subr.mxu0 0.0
        %664 = vmatpush1.msra.mxu0 0.0
        %665 = vmatprep.subr.mxu0 0.0
        %666 = vmatpush1.msra.mxu0 0.0
        %667 = vmatprep.subr.mxu0 0.0
        %668 = vmatpush1.msra.mxu0 0.0
        %669 = vmatprep.subr.mxu0 0.0
        %670 = vmatpush1.msra.mxu0 0.0
        %671 = vmatprep.subr.mxu0 0.0
        %672 = vmatpush1.msra.mxu0 0.0
        %673 = vmatprep.subr.mxu0 0.0
        %674 = vmatpush1.msra.mxu0 0.0
        %675 = vmatprep.subr.mxu0 0.0
        %676 = vmatpush1.msra.mxu0 0.0
        %677 = vmatprep.subr.mxu0 0.0
        %678 = vmatpush1.msra.mxu0 0.0
        %679 = vmatprep.subr.mxu0 0.0
        %680 = vmatpush1.msra.mxu0 0.0
        %681 = vmatprep.subr.mxu0 0.0
        %682 = vmatpush1.msra.mxu0 0.0
        %683 = vmatprep.subr.mxu0 0.0
        %684 = vmatpush1.msra.mxu0 0.0
        %685 = vmatprep.subr.mxu0 0.0
        %686 = vmatpush1.msra.mxu0 0.0
        %687 = vmatprep.subr.mxu0 0.0
        %688 = vmatpush1.msra.mxu0 0.0
        %689 = vmatprep.subr.mxu0 0.0
        %690 = vmatpush1.msra.mxu0 0.0
        %691 = vmatprep.subr.mxu0 0.0
        %692 = vmatpush1.msra.mxu0 0.0
        %693 = vmatprep.subr.mxu0 0.0
        %694 = vmatpush1.msra.mxu0 0.0
        %695 = vmatprep.subr.mxu0 0.0
        %696 = vmatpush1.msra.mxu0 0.0
        %697 = vmatprep.subr.mxu0 0.0
        %698 = vmatpush1.msra.mxu0 0.0
        %699 = vmatprep.subr.mxu0 0.0
        %700 = vmatpush1.msra.mxu0 0.0
        %701 = vmatprep.subr.mxu0 0.0
        %702 = vmatpush1.msra.mxu0 0.0
        %703 = vmatprep.mubr.f32.mxu0 0.0
        %704 = vmatmul.mubr.f32.gmra.mrb[0].mxu0 %v633
        %v705 = vpop.f32.mrb[0].mxu0
        %v706 = vadd.f32 0.0, %v705
        %v707 = vpop.f32.mrb[0].mxu0
        %708 = vdwg.mxu0
        %v710 = vsel %vm178, %v281, 0
        %712 = vmatprep.subr.mxu0 0.0
        %713 = vmatpush1.msra.mxu0 %v395
        %714 = vmatprep.subr.mxu0 0.0
        %715 = vmatpush1.msra.mxu0 %v400
        %716 = vmatprep.subr.mxu0 0.0
        %717 = vmatpush1.msra.mxu0 %v405
        %718 = vmatprep.subr.mxu0 0.0
        %719 = vmatpush1.msra.mxu0 %v410
        %720 = vmatprep.subr.mxu0 0.0
        %721 = vmatpush1.msra.mxu0 0.0
        %722 = vmatprep.subr.mxu0 0.0
        %723 = vmatpush1.msra.mxu0 0.0
        %724 = vmatprep.subr.mxu0 0.0
        %725 = vmatpush1.msra.mxu0 0.0
        %726 = vmatprep.subr.mxu0 0.0
        %727 = vmatpush1.msra.mxu0 0.0
        %728 = vmatprep.subr.mxu0 0.0
        %729 = vmatpush1.msra.mxu0 0.0
        %730 = vmatprep.subr.mxu0 0.0
        %731 = vmatpush1.msra.mxu0 0.0
        %732 = vmatprep.subr.mxu0 0.0
        %733 = vmatpush1.msra.mxu0 0.0
        %734 = vmatprep.subr.mxu0 0.0
        %735 = vmatpush1.msra.mxu0 0.0
        %736 = vmatprep.subr.mxu0 0.0
        %737 = vmatpush1.msra.mxu0 0.0
        %738 = vmatprep.subr.mxu0 0.0
        %739 = vmatpush1.msra.mxu0 0.0
        %740 = vmatprep.subr.mxu0 0.0
        %741 = vmatpush1.msra.mxu0 0.0
        %742 = vmatprep.subr.mxu0 0.0
        %743 = vmatpush1.msra.mxu0 0.0
        %744 = vmatprep.subr.mxu0 0.0
        %745 = vmatpush1.msra.mxu0 0.0
        %746 = vmatprep.subr.mxu0 0.0
        %747 = vmatpush1.msra.mxu0 0.0
        %748 = vmatprep.subr.mxu0 0.0
        %749 = vmatpush1.msra.mxu0 0.0
        %750 = vmatprep.subr.mxu0 0.0
        %751 = vmatpush1.msra.mxu0 0.0
        %752 = vmatprep.subr.mxu0 0.0
        %753 = vmatpush1.msra.mxu0 0.0
        %754 = vmatprep.subr.mxu0 0.0
        %755 = vmatpush1.msra.mxu0 0.0
        %756 = vmatprep.subr.mxu0 0.0
        %757 = vmatpush1.msra.mxu0 0.0
        %758 = vmatprep.subr.mxu0 0.0
        %759 = vmatpush1.msra.mxu0 0.0
        %760 = vmatprep.subr.mxu0 0.0
        %761 = vmatpush1.msra.mxu0 0.0
        %762 = vmatprep.subr.mxu0 0.0
        %763 = vmatpush1.msra.mxu0 0.0
        %764 = vmatprep.subr.mxu0 0.0
        %765 = vmatpush1.msra.mxu0 0.0
        %766 = vmatprep.subr.mxu0 0.0
        %767 = vmatpush1.msra.mxu0 0.0
        %768 = vmatprep.subr.mxu0 0.0
        %769 = vmatpush1.msra.mxu0 0.0
        %770 = vmatprep.subr.mxu0 0.0
        %771 = vmatpush1.msra.mxu0 0.0
        %772 = vmatprep.subr.mxu0 0.0
        %773 = vmatpush1.msra.mxu0 0.0
        %774 = vmatprep.subr.mxu0 0.0
        %775 = vmatpush1.msra.mxu0 0.0
        %776 = vmatprep.mubr.f32.mxu0 0.0
        %777 = vmatmul.mubr.f32.gmra.mrb[0].mxu0 %v710
        %v778 = vpop.f32.mrb[0].mxu0
        %v779 = vadd.f32 0.0, %v778
        %v780 = vpop.f32.mrb[0].mxu0
        %781 = vdwg.mxu0
        %v782 = vstv %s619
        %v783 = vrsqrt.pop %v782
        %v784 = vmul.f32 %v782, %v783
        %vm785 = vcmp.eq.f32.partialorder %v782, inf
        %v786 = vsel %vm785, %v782, %v784
        %vm787 = vcmp.eq.f32.partialorder %v782, 0.0
        %v788 = vand.u32 %v782, 2147483648
        %v789 = vsel %vm787, %v788, %v786
        %s790 = vtos %v789
        %v791 = vstv %s631
        %v792 = vrsqrt.pop %v791
        %v793 = vmul.f32 %v791, %v792
        %vm794 = vcmp.eq.f32.partialorder %v791, inf
        %v795 = vsel %vm794, %v791, %v793
        %vm796 = vcmp.eq.f32.partialorder %v791, 0.0
        %v797 = vand.u32 %v791, 2147483648
        %v798 = vsel %vm796, %v797, %v795
        %s799 = vtos %v798
        %s800 = smul.f32 %s790, %s799
        %s801 = sadd.f32 %s800, 1e-12
        %v802 = vstv %s801
        %v803 = vrcp.pop %v802
        %s804 = vtos %v803
        %s805 = smul.f32 2.0, %s804
        %s806 = smul.f32 %s805, %s599
        %s807 = sadd.f32 %s619, 1e-12
        %v808 = vstv %s807
        %v809 = vrcp.pop %v808
        %s810 = vtos %v809
        %s811 = smul.f32 %s806, %s810
        %v812 = vstv %s805
        %v813 = vmul.f32 %v812, %v706
        %v814 = vadd.f32 %v166, %v813
        %v815 = vstv %s811
        %v816 = vmul.f32 %v815, %v779
        %v817 = vsub.f32 %v814, %v816
        %818 = vst.msk [vmem:[%s161] sm:$0xff] %vm178, %v817
        %s819 = sand.u32 %s93, 1
        %s820 = scalar_lea.sflag [#allocation3], %s819
        %s821 = sand.u32 %s93, 1
        %s822 = smul.addr %s821, 8
        %s823 = scalar_lea.vmem [#allocation2], %s822
        // Predicated region
        $region33: #{tpu_custom_call.1} parent=31 // pred_check
          %p824 = pneg %p103
        $region34: #{tpu_custom_call.1} parent=31 // pred_check_branch
          %826 = sbr.rel (%p824) target = $region36
        $region35: #{tpu_custom_call.1} parent=31 // pred_region
          %s828 = ssub.s32 128, 128
          %829 = vsyncadd %s820, %s828
          %s830 = smul.addr %s17, 128
          %s831 = scalar_lea.hbm %s3, %s830
          %s833 = sshll.u32 %s823, 4
          %s834 = int_to_ptr.vmem [resolvable:$true] %s833
          %836 = dma.vmem_to_hbm [thread:$0]  %s834, 128, %s831, %s820
        $region36: #{tpu_custom_call.1} parent=31 // pred_fallthru
          _
      $region32: #{tpu_custom_call.1} parent=5 // pred_fallthru
        _
      %p837 = scmp.le.s32.totalorder 2, %s12
      // Predicated region
      $region37: #{tpu_custom_call.1} parent=5 // pred_check
        %p838 = pneg %p837
      $region38: #{tpu_custom_call.1} parent=5 // pred_check_branch
        %840 = sbr.rel (%p838) target = $region40
      $region39: #{tpu_custom_call.1} parent=5 // pred_region
        %s841 = ssub.s32 %s12, 2
        // Predicated region
        $region41: #{tpu_custom_call.1} parent=39 // pred_check
          %p842 = pneg %p109
        $region42: #{tpu_custom_call.1} parent=39 // pred_check_branch
          %844 = sbr.rel (%p842) target = $region44
        $region43: #{tpu_custom_call.1} parent=39 // pred_region
          %s845 = sand.u32 %s94, 1
          %s846 = scalar_lea.sflag [#allocation3], %s845
          %s847 = sand.u32 %s94, 1
          %s848 = smul.addr %s847, 8
          %s849 = scalar_lea.vmem [#allocation2], %s848
          %850 = dma.done %s846, 128
        $region44: #{tpu_custom_call.1} parent=39 // pred_fallthru
          _
      $region40: #{tpu_custom_call.1} parent=5 // pred_fallthru
        _
    $region6: #{tpu_custom_call.1} parent=1 // loop_footer
      %s16 = sadd.s32 1, %s12
    $region7: #{tpu_custom_call.1} parent=1 // loop_footer_branch
      %11 = sbr.rel target = $region3
    $region8: #{tpu_custom_call.1} parent=1 // loop_exit
      _
    %851 = vsyncpa [#allocation3], 1
    %s852 = scalar_lea.sflag [#allocation3], 1
    %853 = vsyncpa %s852, 1

</llo_original>
